<compile_context>
chip_gen: v7x
topology: tpu7x:2x2x1
jax: 0.10.0
libtpu: 0.0.40
codegen_flags: <defaults>
</compile_context>

<pallas_src>
import jax
import jax.numpy as jnp
from jax.experimental import pallas as pl
from jax.experimental.pallas import tpu as pltpu

_SUBLANE = 8
_LANE = 128


def _device_vmem_capacity_bytes():
    """Physical per-core VMEM (128 MiB v5e/v6e, 64 MiB v7x); conservative fallback."""
    try:
        info = pltpu.get_tpu_info()
        cap = getattr(info, "vmem_capacity_bytes", None)
        if cap:
            return int(cap)
    except Exception:
        pass
    return 64 * 1024 * 1024


def _pick_lane_width(L):
    """Divisor C of L that is a multiple of 128 (lane-dense stores), maximizing sublane
    occupancy of the (L // C, C) plane; tie-break toward larger C.  Falls back to C = L
    (legal via the full-array-dim exemption) when no 128-multiple divisor exists."""
    best_c, best_occ = None, -1.0
    for c in range(_LANE, L + 1, _LANE):
        if L % c:
            continue
        rows = L // c
        occ = rows / (-(-rows // _SUBLANE) * _SUBLANE)
        if occ > best_occ or (occ == best_occ and c > best_c):
            best_c, best_occ = c, occ
    # TODO(synk): for L with no 128-multiple divisor, pad the flattened axis in the
    # wrapper (masked tail) instead of falling back to a possibly lane-masked full width.
    return best_c if best_c is not None else L


def _largest_divisor_leq(n, cap):
    cap = max(1, min(cap, n))
    for d in range(cap, 0, -1):
        if n % d == 0:
            return d
    return 1


def _largest_divisor_multiple_of(n, unit, cap):
    cap = min(cap, n)
    best, d = None, unit
    while d <= cap:
        if n % d == 0:
            best = d
        d += unit
    return best


def _choose_tiles(B, Rb, C, itemsize, target_bytes):
    """(tb, trb): batch-block and pe-row-block sizes for the (B, Rb, C) view."""
    row_bytes = C * itemsize
    if Rb * row_bytes <= target_bytes:
        trb = Rb                                    # whole pe period in one resident block
        tb = _largest_divisor_leq(B, max(1, target_bytes // (Rb * row_bytes)))
    else:
        tb = 1
        trb = _largest_divisor_multiple_of(
            Rb, _SUBLANE, max(_SUBLANE, target_bytes // row_bytes))
        if trb is None:
            trb = Rb                                # no legal smaller block; take the full dim
    return tb, trb


def _add_pe_kernel(x_ref, pe_ref, o_ref):
    # x_ref / o_ref: (tb, trb, C); pe_ref: (trb, C), broadcast over the batch-block axis.
    o_ref[...] = x_ref[...] + pe_ref[...]


def positional_embeddings_forward(x, pos_enc, *, target_tile_bytes=None, donate_x=False):
    """x: (B, S, D), pos_enc: (1, S, D)  ->  (B, S, D) = x + pos_enc (broadcast over B)."""
    B, S, D = x.shape
    assert pos_enc.shape == (1, S, D), (pos_enc.shape, (1, S, D))

    L = S * D
    itemsize = jnp.dtype(x.dtype).itemsize

    vmem_cap = _device_vmem_capacity_bytes()
    if target_tile_bytes is None:
        # ~4 MiB tiles on 64 MiB-VMEM chips (v7x), ~6 MiB on 128 MiB chips (v5e/v6e).
        target_tile_bytes = (4 << 20) if vmem_cap <= (64 << 20) else (6 << 20)

    C = _pick_lane_width(L)
    Rb = L // C
    tb, trb = _choose_tiles(B, Rb, C, itemsize, target_tile_bytes)

    # Free contiguous reshapes (layout-only in the XLA wrapper).
    x3 = x.reshape(B, Rb, C)
    pe2 = pos_enc.astype(x.dtype).reshape(Rb, C)   # add in x.dtype (matches output dtype)

    # Grid: seq-blocks OUTER, batch-blocks INNER.  pe's block index only depends on the
    # outer axis, so consecutive inner steps reuse the same VMEM copy (re-DMA elided).
    grid = (Rb // trb, B // tb)

    x_blk = tb * trb * C * itemsize
    pe_blk = trb * C * itemsize
    need = 2 * (2 * x_blk) + 2 * pe_blk            # double-buffered x + out, pe
    vmem_limit = int(min(vmem_cap * 3 // 4, max(32 << 20, need + (8 << 20))))

    out3 = pl.pallas_call(
        _add_pe_kernel,
        out_shape=jax.ShapeDtypeStruct((B, Rb, C), x.dtype),
        grid=grid,
        in_specs=[
            pl.BlockSpec((tb, trb, C), lambda j, i: (i, j, 0)),   # x
            pl.BlockSpec((trb, C), lambda j, i: (j, 0)),          # pe (constant over inner axis)
        ],
        out_specs=pl.BlockSpec((tb, trb, C), lambda j, i: (i, j, 0)),
        compiler_params=pltpu.CompilerParams(
            dimension_semantics=("parallel", "parallel"),
            vmem_limit_bytes=vmem_limit,
        ),
        input_output_aliases=({0: 0} if donate_x else {}),
    )(x3, pe2)

    return out3.reshape(B, S, D)


if __name__ == "__main__":
    # Small shapes consistent with the module: d_model=32, num_patches=15 -> S=16, batch=2.
    B, num_patches, d_model = 2, 15, 32
    S = num_patches + 1

    key = jax.random.PRNGKey(0)
    kx, kp = jax.random.split(key)

    x = jax.random.normal(kx, (B, S, d_model), dtype=jnp.float32)
    # torch init is zeros; use deterministic random values so the kernel's work is visible.
    pos_enc = 0.02 * jax.random.normal(kp, (1, S, d_model), dtype=jnp.float32)

    out = positional_embeddings_forward(x, pos_enc)
    out = jax.block_until_ready(out)

    ref = x + pos_enc
    assert out.shape == (B, S, d_model)
    assert out.dtype == x.dtype
    assert jnp.allclose(out, ref, atol=1e-6, rtol=1e-6)

    print("KERNEL_OK")
</pallas_src>

<mosaic_0001>
module attributes {stable_mosaic.version = 11 : i64} {
  func.func @_add_pe_kernel(%arg0: i32, %arg1: i32, %arg2: memref<2x4x128xf32, #tpu.memory_space<vmem>>, %arg3: memref<4x128xf32, #tpu.memory_space<vmem>>, %arg4: memref<2x4x128xf32, #tpu.memory_space<vmem>>) attributes {dimension_semantics = [#tpu.dimension_semantics<parallel>, #tpu.dimension_semantics<parallel>], iteration_bounds = array<i64: 1, 1>, scalar_prefetch = 0 : i64, scratch_operands = 0 : i64, tpu.core_type = #tpu.core_type<tc>, window_params = [{transform_indices = @transform_0, window_bounds = array<i64: 2, 4, 128>}, {transform_indices = @transform_1, window_bounds = array<i64: 4, 128>}, {transform_indices = @transform_2, window_bounds = array<i64: 2, 4, 128>}]} {
    %c0 = arith.constant 0 : index
    %c0_0 = arith.constant 0 : index
    %c0_1 = arith.constant 0 : index
    %0 = vector.load %arg2[%c0, %c0_0, %c0_1] : memref<2x4x128xf32, #tpu.memory_space<vmem>>, vector<2x4x128xf32>
    %c0_2 = arith.constant 0 : index
    %c0_3 = arith.constant 0 : index
    %1 = vector.load %arg3[%c0_2, %c0_3] : memref<4x128xf32, #tpu.memory_space<vmem>>, vector<4x128xf32>
    %2 = vector.shape_cast %1 : vector<4x128xf32> to vector<1x4x128xf32>
    %3 = vector.broadcast %2 : vector<1x4x128xf32> to vector<2x4x128xf32>
    %4 = arith.addf %0, %3 : vector<2x4x128xf32>
    %c0_4 = arith.constant 0 : index
    %c0_5 = arith.constant 0 : index
    %c0_6 = arith.constant 0 : index
    %5 = vector.load %arg4[%c0_4, %c0_5, %c0_6] : memref<2x4x128xf32, #tpu.memory_space<vmem>>, vector<2x4x128xf32>
    tpu.vector_store %arg4[%c0_4, %c0_5, %c0_6], %4 {strides = array<i32>} : memref<2x4x128xf32, #tpu.memory_space<vmem>>, vector<2x4x128xf32>,
    return
  }
  func.func @transform_0(%arg0: i32, %arg1: i32) -> (i32, i32, i32) {
    %c0_i32 = arith.constant 0 : i32
    %c0_i32_0 = arith.constant 0 : i32
    return %arg1, %arg0, %c0_i32 : i32, i32, i32
  }
  func.func @transform_1(%arg0: i32, %arg1: i32) -> (i32, i32) {
    %c0_i32 = arith.constant 0 : i32
    %c0_i32_0 = arith.constant 0 : i32
    return %arg0, %c0_i32 : i32, i32
  }
  func.func @transform_2(%arg0: i32, %arg1: i32) -> (i32, i32, i32) {
    %c0_i32 = arith.constant 0 : i32
    %c0_i32_0 = arith.constant 0 : i32
    return %arg1, %arg0, %c0_i32 : i32, i32, i32
  }
}

</mosaic_0001>

<llo_original>
// kernel: tpu_custom_call.1
$region0: #{tpu_custom_call.1}
  #allocation0 [shape = 'u32[]', space=smem, size = 0x4, offset = 0x4, fixed_abs, tag = 'smem constant byte address 0x4 - core index']
  #allocation1 [shape = 'u32[144,128]{1,0:T(1,128)}', space=vmem, size = 0x12000, scoped, tag = 'internal scratch']
  %s0 = inlined_call_operand.hbm [shape: f32[2,4,128], index: 0, kind: input, shape index: {}]
  %s1 = inlined_call_operand.hbm [shape: f32[4,128], index: 1, kind: input, shape index: {}]
  %s2 = inlined_call_operand.hbm [shape: f32[2,4,128], index: 2, kind: output, shape index: {}]
  %s3 = sld [smem:[#allocation0]]
  $region26: #{tpu_custom_call.1} parent=0
    _
  %s5 = ssub.s32 1, %s3
  %s6 = scalar_select 0, %s5, %s3
  $region1: #{tpu_custom_call.1} parent=0
    #allocation2 [shape = 'u8[4096]{0}', space=vmem, size = 0x1000, scoped, tag = 'input window, operand 0, single buffered']
    #allocation3 [shape = 's32[1]{0}', space=sflag, size = 0x4, scoped, tag = 'scoped memory for tpu_custom_call.1']
    #allocation4 [shape = 's32[1]{0}', space=sflag, size = 0x4, scoped, tag = 'scoped memory for tpu_custom_call.1']
    #allocation5 [shape = 'u8[2048]{0}', space=vmem, size = 0x800, scoped, tag = 'input window, operand 1, single buffered']
    #allocation6 [shape = 's32[1]{0}', space=sflag, size = 0x4, scoped, tag = 'scoped memory for tpu_custom_call.1']
    #allocation7 [shape = 'u8[4096]{0}', space=vmem, size = 0x1000, scoped, tag = 'output window, operand 0, single buffered']
    %7 = vsyncpa [#allocation3], 0
    %8 = vsyncpa [#allocation6], 0
    %9 = vsyncpa [#allocation4], 0
    // Predicated region
    $region2: #{tpu_custom_call.1} parent=1 // pred_check
      _
    $region3: #{tpu_custom_call.1} parent=1 // pred_check_branch
      %11 = sbr.rel (0) target = $region5
    $region4: #{tpu_custom_call.1} parent=1 // pred_region
      %s13 = ssub.s32 128, 128
      %14 = vsyncadd [#allocation3], %s13
      %s15 = sshll.u32 [#allocation2], 4
      %s16 = int_to_ptr.vmem [resolvable:$true] %s15
      %21 = dma.hbm_to_vmem [thread:$0]  %s0, 128, %s16, [#allocation3], 64, 64, 4
    $region5: #{tpu_custom_call.1} parent=1 // pred_fallthru
      _
    // Predicated region
    $region6: #{tpu_custom_call.1} parent=1 // pred_check
      _
    $region7: #{tpu_custom_call.1} parent=1 // pred_check_branch
      %23 = sbr.rel (0) target = $region9
    $region8: #{tpu_custom_call.1} parent=1 // pred_region
      %s25 = ssub.s32 64, 64
      %26 = vsyncadd [#allocation6], %s25
      %s28 = sshll.u32 [#allocation5], 4
      %s29 = int_to_ptr.vmem [resolvable:$true] %s28
      %31 = dma.hbm_to_vmem [thread:$0]  %s1, 64, %s29, [#allocation6]
    $region9: #{tpu_custom_call.1} parent=1 // pred_fallthru
      _
    // Predicated region
    $region10: #{tpu_custom_call.1} parent=1 // pred_check
      _
    $region11: #{tpu_custom_call.1} parent=1 // pred_check_branch
      %33 = sbr.rel (0) target = $region13
    $region12: #{tpu_custom_call.1} parent=1 // pred_region
      %34 = dma.done [#allocation3], 128
    $region13: #{tpu_custom_call.1} parent=1 // pred_fallthru
      _
    // Predicated region
    $region14: #{tpu_custom_call.1} parent=1 // pred_check
      _
    $region15: #{tpu_custom_call.1} parent=1 // pred_check_branch
      %36 = sbr.rel (0) target = $region17
    $region16: #{tpu_custom_call.1} parent=1 // pred_region
      %37 = dma.done [#allocation6], 64
    $region17: #{tpu_custom_call.1} parent=1 // pred_fallthru
      _
    %v38 = vld [vmem:[#allocation2] sm:$0xf]
    %v39 = vld [vmem:[#allocation2 + $0x4] sm:$0xf]
    %v40 = vld [vmem:[#allocation5] sm:$0xf]
    %v41 = vadd.f32 %v38, %v40
    %v42 = vadd.f32 %v39, %v40
    %43 = vst [vmem:[#allocation7] sm:$0xf] %v41
    %44 = vst [vmem:[#allocation7 + $0x4] sm:$0xf] %v42
    // Predicated region
    $region18: #{tpu_custom_call.1} parent=1 // pred_check
      _
    $region19: #{tpu_custom_call.1} parent=1 // pred_check_branch
      %46 = sbr.rel (0) target = $region21
    $region20: #{tpu_custom_call.1} parent=1 // pred_region
      %s48 = ssub.s32 128, 128
      %49 = vsyncadd [#allocation4], %s48
      %s50 = sshll.u32 [#allocation7], 4
      %s51 = int_to_ptr.vmem [resolvable:$true] %s50
      %56 = dma.vmem_to_hbm [thread:$0]  %s51, 128, %s2, [#allocation4], 64, 64, 4
    $region21: #{tpu_custom_call.1} parent=1 // pred_fallthru
      _
    // Predicated region
    $region22: #{tpu_custom_call.1} parent=1 // pred_check
      _
    $region23: #{tpu_custom_call.1} parent=1 // pred_check_branch
      %58 = sbr.rel (0) target = $region25
    $region24: #{tpu_custom_call.1} parent=1 // pred_region
      %59 = dma.done [#allocation4], 128
    $region25: #{tpu_custom_call.1} parent=1 // pred_fallthru
      _
    %60 = vsyncpa [#allocation3], 1
    %61 = vsyncpa [#allocation6], 1
    %62 = vsyncpa [#allocation4], 1

</llo_original>
